<compile_context>
chip_gen: v7x
topology: tpu7x:2x2x1
jax: 0.10.0
libtpu: 0.0.40
codegen_flags: <defaults>
</compile_context>

<pallas_src>
import jax
import jax.numpy as jnp
from jax import lax
from jax.experimental import pallas as pl
from jax.experimental.pallas import tpu as pltpu
import numpy as np

_PAD = 128  # guard lanes on both ends of the flat padded input scratch


def _conv_prelu_kernel(x_ref, top_ref, bot_ref, w_ref, ba_ref, col_ref,
                       o_ref, xext_ref):
    """One (batch, H-tile) step: 3x3 conv (im2col matmul) + bias + PReLU.

    x_ref   : (1, Cin, Ht*W)   flat lane-dense input tile
    top_ref : (1, Cin, 8, W)   8-row block holding the top halo row (row 7)
    bot_ref : (1, Cin, 8, W)   8-row block holding the bottom halo row (row 0)
    w_ref   : (Cout, 9*Cin)    im2col weight matrix (compute dtype)
    ba_ref  : (Cout, 2)        column 0 = bias, column 1 = PReLU alpha (f32)
    col_ref : (1, Ht*W)        int32 column index (x) of every output lane
    o_ref   : (1, Cout, Ht*W)  lane-dense flat conv output tile
    xext_ref: (Cin, 2*_PAD + (Ht+2)*W) flat zero-guarded padded input scratch
    """
    cin = x_ref.shape[1]
    l = x_ref.shape[2]
    w = top_ref.shape[3]
    ht = l // w
    ext = (ht + 2) * w
    cdt = xext_ref.dtype
    hi = pl.program_id(1)
    n_h = pl.num_programs(1)

    # Guard lanes (only ever read under a zero mask, but keep them defined).
    xext_ref[:, 0:_PAD] = jnp.zeros((cin, _PAD), cdt)
    xext_ref[:, _PAD + ext:_PAD + ext + _PAD] = jnp.zeros((cin, _PAD), cdt)

    # Top halo row (global row hi*Ht - 1); zeros at the image boundary.
    @pl.when(hi > 0)
    def _():
        xext_ref[:, _PAD:_PAD + w] = top_ref[0][:, 7, :]

    @pl.when(hi == 0)
    def _():
        xext_ref[:, _PAD:_PAD + w] = jnp.zeros((cin, w), cdt)

    # Main tile rows (lane-dense store at offset _PAD + W).
    xext_ref[:, _PAD + w:_PAD + w + l] = x_ref[0]

    # Bottom halo row (global row (hi+1)*Ht); zeros at the image boundary.
    @pl.when(hi < n_h - 1)
    def _():
        xext_ref[:, _PAD + (ht + 1) * w:_PAD + ext] = bot_ref[0][:, 0, :]

    @pl.when(hi == n_h - 1)
    def _():
        xext_ref[:, _PAD + (ht + 1) * w:_PAD + ext] = jnp.zeros((cin, w), cdt)

    # Horizontal zero-padding masks (broadcast over Cin rows).
    col = col_ref[...]                                   # (1, Ht*W) int32
    left_edge = col == 0
    right_edge = col == (w - 1)

    # 9 taps = static lane slices of the flat padded tile (kx-1 lane offset),
    # masked at the image border. No fold/reshape, no relayout copies.
    taps = []
    for ky in range(3):
        for kx in range(3):
            start = _PAD + ky * w + kx - 1
            t = xext_ref[:, start:start + l]             # (Cin, Ht*W)
            if kx == 0:
                t = jnp.where(left_edge, jnp.zeros_like(t), t)
            elif kx == 2:
                t = jnp.where(right_edge, jnp.zeros_like(t), t)
            taps.append(t)
    patches = jnp.concatenate(taps, axis=0)              # (9*Cin, Ht*W)

    # Single MXU matmul with f32 accumulation; bias + PReLU fused in f32.
    acc = jnp.dot(w_ref[...], patches, preferred_element_type=jnp.float32)
    acc = acc + ba_ref[:, 0:1]                            # bias
    y = jnp.where(acc > 0, acc, acc * ba_ref[:, 1:2])     # PReLU
    o_ref[0] = y.astype(o_ref.dtype)


def _tpu_vmem_capacity_bytes():
    try:
        return int(pltpu.get_tpu_info().vmem_capacity_bytes)
    except Exception:
        return 64 * 1024 * 1024                          # v7x-safe fallback


def _vmem_bytes_estimate(d, w, cin, cout, compute_dtype):
    """Per-step VMEM footprint for an H-tile of d rows (pipelined blocks x2 +
    scratch + in-kernel temporaries), with lane padding to 128."""
    bpe = jnp.dtype(compute_dtype).itemsize
    lane = lambda x: ((x + 127) // 128) * 128
    l = d * w
    in_blk = cin * lane(l) * bpe * 2
    halo_blk = 2 * cin * 8 * lane(w) * bpe * 2
    out_blk = cout * lane(l) * 4 * 2
    w_blk = cout * lane(9 * cin) * bpe * 2
    ba_blk = cout * lane(2) * 4 * 2
    col_blk = lane(l) * 4 * 2
    scratch = cin * lane(2 * _PAD + (d + 2) * w) * bpe
    patches = 2 * 9 * cin * lane(l) * bpe                # taps + concat copy
    accum = 2 * cout * lane(l) * 4                       # f32 acc + PReLU temp
    total = (in_blk + halo_blk + out_blk + w_blk + ba_blk + col_blk
             + scratch + patches + accum)
    return int(1.15 * total)


def _pick_h_tile(n, h, w, cin, cout, compute_dtype, budget):
    """Largest H-tile (multiple of 16 rows if possible, lane-dense output)
    whose estimated VMEM footprint fits the per-generation budget."""
    step = 16 if h % 16 == 0 else 8
    cands = sorted({d for d in range(step, h + 1, step)
                    if h % d == 0 and ((d * w) % 128 == 0 or d == h)})
    if not cands:
        cands = [h]
    best = cands[0]
    for d in cands:
        if _vmem_bytes_estimate(d, w, cin, cout, compute_dtype) <= budget:
            best = d
    # Keep >= 2 grid steps on the H axis for a single-image batch (megacore).
    if n == 1 and best == h:
        smaller = [d for d in cands if d < h and
                   _vmem_bytes_estimate(d, w, cin, cout, compute_dtype) <= budget]
        if smaller:
            best = smaller[-1]
    return best


def upsample_block_pallas(x_nchw, w_oihw, bias, alpha, scale_factor,
                          *, h_tile=None, compute_dtype=jnp.bfloat16,
                          out_dtype=jnp.float32):
    """x_nchw: (N, C, H, W) float32. Returns (N, C, H*r, W*r) like PyTorch."""
    n, c, h, w = x_nchw.shape
    r = scale_factor
    cout = c * r * r
    assert w_oihw.shape == (cout, c, 3, 3)
    assert h % 8 == 0, "kernel tiles H in multiples of 8 rows"

    cap = _tpu_vmem_capacity_bytes()
    budget = int(cap * 0.60)
    if h_tile is None:
        h_tile = _pick_h_tile(n, h, w, c, cout, compute_dtype, budget)
    assert h % h_tile == 0 and h_tile % 8 == 0
    assert (h_tile * w) % 128 == 0 or h_tile == h, "output tile must be lane-dense"
    n_h = h // h_tile
    hb = h_tile // 8                                     # halo stride in 8-row blocks
    l = h_tile * w

    # bf16 inputs/weights for HBM+MXU; bias/alpha and elementwise tail in f32.
    x_c = x_nchw.astype(compute_dtype)                   # (N, C, H, W)
    x_flat = x_c.reshape(n, c, h * w)                    # free metadata reshape
    # OIHW -> (Cout, ky, kx, Cin) -> (Cout, 9*Cin) im2col weight matrix.
    w2d = jnp.transpose(w_oihw, (0, 2, 3, 1)).reshape(cout, 9 * c).astype(compute_dtype)
    # PixelShuffle maps conv channel o to PReLU channel o // r^2.
    ba = jnp.stack([bias.astype(jnp.float32),
                    jnp.repeat(alpha.astype(jnp.float32), r * r)], axis=1)  # (Cout, 2)
    col = jnp.asarray((np.arange(l) % w).astype(np.int32)[None, :])         # (1, Ht*W)

    need = _vmem_bytes_estimate(h_tile, w, c, cout, compute_dtype)
    vmem_limit = int(min(cap * 0.98, max(cap * 0.75, need * 1.2)))

    conv_flat = pl.pallas_call(
        _conv_prelu_kernel,
        out_shape=jax.ShapeDtypeStruct((n, cout, h * w), out_dtype),
        grid_spec=pltpu.PrefetchScalarGridSpec(
            num_scalar_prefetch=0,
            grid=(n, n_h),
            in_specs=[
                pl.BlockSpec((1, c, l), lambda b, i: (b, 0, i)),
                pl.BlockSpec((1, c, 8, w),
                             lambda b, i: (b, 0, jnp.maximum(i * hb - 1, 0), 0)),
                pl.BlockSpec((1, c, 8, w),
                             lambda b, i: (b, 0, jnp.minimum((i + 1) * hb,
                                                             h // 8 - 1), 0)),
                pl.BlockSpec((cout, 9 * c), lambda b, i: (0, 0)),
                pl.BlockSpec((cout, 2), lambda b, i: (0, 0)),
                pl.BlockSpec((1, l), lambda b, i: (0, 0)),
            ],
            out_specs=pl.BlockSpec((1, cout, l), lambda b, i: (b, 0, i)),
            scratch_shapes=[pltpu.VMEM((c, 2 * _PAD + (h_tile + 2) * w),
                                       compute_dtype)],
        ),
        compiler_params=pltpu.CompilerParams(
            dimension_semantics=("parallel", "parallel"),
            vmem_limit_bytes=vmem_limit,
        ),
    )(x_flat, x_c, x_c, w2d, ba, col)

    # PixelShuffle: layout glue on the flat, lane-dense kernel output.
    y = conv_flat.reshape(n, c, r, r, h, w)
    y = jnp.transpose(y, (0, 1, 4, 2, 5, 3))             # (N, C, H, r, W, r)
    return y.reshape(n, c, h * r, w * r)


def _reference(x_nchw, w_oihw, bias, alpha, r, compute_dtype=jnp.float32):
    """Pure-JAX reference matching PyTorch semantics (same input quantization)."""
    xq = x_nchw.astype(compute_dtype).astype(jnp.float32)
    wq = w_oihw.astype(compute_dtype).astype(jnp.float32)
    conv = lax.conv_general_dilated(
        xq, wq, window_strides=(1, 1), padding=((1, 1), (1, 1)),
        dimension_numbers=("NCHW", "OIHW", "NCHW"),
        precision=lax.Precision.HIGHEST,
    ) + bias[None, :, None, None]
    n, cr2, h, w = conv.shape
    c = cr2 // (r * r)
    ps = conv.reshape(n, c, r, r, h, w)
    ps = jnp.transpose(ps, (0, 1, 4, 2, 5, 3)).reshape(n, c, h * r, w * r)
    return jnp.where(ps > 0, ps, ps * alpha[None, :, None, None])


if __name__ == "__main__":
    key = jax.random.PRNGKey(0)
    k_x, k_w, k_b = jax.random.split(key, 3)

    N, C, H, W = 2, 4, 16, 16
    R = 2  # scale_factor
    COUT = C * R * R

    x = jax.random.normal(k_x, (N, C, H, W), jnp.float32)
    # Deterministic synthetic "init" of the module parameters.
    w = jax.random.normal(k_w, (COUT, C, 3, 3), jnp.float32) * 0.1
    b = jax.random.normal(k_b, (COUT,), jnp.float32) * 0.1
    alpha = jnp.full((C,), 0.25, jnp.float32)  # PReLU default init

    ref = _reference(x, w, b, alpha, R, compute_dtype=jnp.bfloat16)

    # Multi-tile path: h_tile=8 -> grid (2 batches, 2 H tiles), exercises the
    # top/bottom halo handling.
    out = upsample_block_pallas(x, w, b, alpha, R, h_tile=8,
                                compute_dtype=jnp.bfloat16)
    out = jax.block_until_ready(out)
    np.testing.assert_allclose(np.asarray(out), np.asarray(ref),
                               rtol=1e-3, atol=1e-3)
    assert out.shape == (N, C, H * R, W * R)

    # Auto-tiled path (per-generation VMEM budget picks the tile).
    out2 = upsample_block_pallas(x, w, b, alpha, R, compute_dtype=jnp.bfloat16)
    out2 = jax.block_until_ready(out2)
    np.testing.assert_allclose(np.asarray(out2), np.asarray(ref),
                               rtol=1e-3, atol=1e-3)

    print("KERNEL_OK")
</pallas_src>

<mosaic_0001>
module attributes {stable_mosaic.version = 11 : i64} {
  func.func @_conv_prelu_kernel(%arg0: i32, %arg1: i32, %arg2: memref<1x4x128xbf16, #tpu.memory_space<vmem>>, %arg3: memref<1x4x8x16xbf16, #tpu.memory_space<vmem>>, %arg4: memref<1x4x8x16xbf16, #tpu.memory_space<vmem>>, %arg5: memref<16x36xbf16, #tpu.memory_space<vmem>>, %arg6: memref<16x2xf32, #tpu.memory_space<vmem>>, %arg7: memref<1x128xi32, #tpu.memory_space<vmem>>, %arg8: memref<1x16x128xf32, #tpu.memory_space<vmem>>, %arg9: memref<4x416xbf16, #tpu.memory_space<vmem>>) attributes {dimension_semantics = [#tpu.dimension_semantics<parallel>, #tpu.dimension_semantics<parallel>], iteration_bounds = array<i64: 2, 2>, scalar_prefetch = 0 : i64, scratch_operands = 1 : i64, tpu.core_type = #tpu.core_type<tc>, window_params = [{transform_indices = @transform_0, window_bounds = array<i64: 1, 4, 128>}, {transform_indices = @transform_1, window_bounds = array<i64: 1, 4, 8, 16>}, {transform_indices = @transform_2, window_bounds = array<i64: 1, 4, 8, 16>}, {pipeline_mode = #tpu.pipeline_mode<synchronous>, transform_indices = @transform_3, window_bounds = array<i64: 16, 36>}, {pipeline_mode = #tpu.pipeline_mode<synchronous>, transform_indices = @transform_4, window_bounds = array<i64: 16, 2>}, {pipeline_mode = #tpu.pipeline_mode<synchronous>, transform_indices = @transform_5, window_bounds = array<i64: 1, 128>}, {transform_indices = @transform_6, window_bounds = array<i64: 1, 16, 128>}]} {
    %cst = arith.constant 0.000000e+00 : bf16
    %0 = vector.broadcast %cst : bf16 to vector<4x128xbf16>
    %c0 = arith.constant 0 : index
    %c0_0 = arith.constant 0 : index
    %1 = vector.load %arg9[%c0, %c0_0] : memref<4x416xbf16, #tpu.memory_space<vmem>>, vector<4x128xbf16>
    tpu.vector_store %arg9[%c0, %c0_0], %0 {strides = array<i32>} : memref<4x416xbf16, #tpu.memory_space<vmem>>, vector<4x128xbf16>,
    %cst_1 = arith.constant 0.000000e+00 : bf16
    %2 = vector.broadcast %cst_1 : bf16 to vector<4x128xbf16>
    %c0_2 = arith.constant 0 : index
    %c288 = arith.constant 288 : index
    %3 = vector.load %arg9[%c0_2, %c288] : memref<4x416xbf16, #tpu.memory_space<vmem>>, vector<4x128xbf16>
    tpu.vector_store %arg9[%c0_2, %c288], %2 {strides = array<i32>} : memref<4x416xbf16, #tpu.memory_space<vmem>>, vector<4x128xbf16>,
    %c0_i32 = arith.constant 0 : i32
    %4 = arith.cmpi sgt, %arg1, %c0_i32 : i32
    %5 = arith.extui %4 : i1 to i32
    %c0_i32_3 = arith.constant 0 : i32
    %6 = arith.cmpi ne, %5, %c0_i32_3 : i32
    scf.if %6 {
      %c0_42 = arith.constant 0 : index
      %c0_43 = arith.constant 0 : index
      %c0_44 = arith.constant 0 : index
      %c0_45 = arith.constant 0 : index
      %72 = vector.load %arg3[%c0_42, %c0_43, %c0_44, %c0_45] : memref<1x4x8x16xbf16, #tpu.memory_space<vmem>>, vector<1x4x8x16xbf16>
      %73 = vector.shape_cast %72 : vector<1x4x8x16xbf16> to vector<4x8x16xbf16>
      %74 = vector.extract_strided_slice %73 {offsets = [0, 7, 0], sizes = [4, 1, 16], strides = [1, 1, 1]} : vector<4x8x16xbf16> to vector<4x1x16xbf16>
      %75 = vector.shape_cast %74 : vector<4x1x16xbf16> to vector<4x16xbf16>
      %c0_46 = arith.constant 0 : index
      %c128_47 = arith.constant 128 : index
      %76 = vector.load %arg9[%c0_46, %c128_47] : memref<4x416xbf16, #tpu.memory_space<vmem>>, vector<4x16xbf16>
      tpu.vector_store %arg9[%c0_46, %c128_47], %75 {strides = array<i32>} : memref<4x416xbf16, #tpu.memory_space<vmem>>, vector<4x16xbf16>,
    } else {
    }
    %c0_i32_4 = arith.constant 0 : i32
    %7 = arith.cmpi eq, %arg1, %c0_i32_4 : i32
    %8 = arith.extui %7 : i1 to i32
    %c0_i32_5 = arith.constant 0 : i32
    %9 = arith.cmpi ne, %8, %c0_i32_5 : i32
    scf.if %9 {
      %cst_42 = arith.constant 0.000000e+00 : bf16
      %72 = vector.broadcast %cst_42 : bf16 to vector<4x16xbf16>
      %c0_43 = arith.constant 0 : index
      %c128_44 = arith.constant 128 : index
      %73 = vector.load %arg9[%c0_43, %c128_44] : memref<4x416xbf16, #tpu.memory_space<vmem>>, vector<4x16xbf16>
      tpu.vector_store %arg9[%c0_43, %c128_44], %72 {strides = array<i32>} : memref<4x416xbf16, #tpu.memory_space<vmem>>, vector<4x16xbf16>,
    } else {
    }
    %c0_6 = arith.constant 0 : index
    %c0_7 = arith.constant 0 : index
    %c0_8 = arith.constant 0 : index
    %10 = vector.load %arg2[%c0_6, %c0_7, %c0_8] : memref<1x4x128xbf16, #tpu.memory_space<vmem>>, vector<1x4x128xbf16>
    %11 = vector.shape_cast %10 : vector<1x4x128xbf16> to vector<4x128xbf16>
    %c0_9 = arith.constant 0 : index
    %c144 = arith.constant 144 : index
    %12 = vector.load %arg9[%c0_9, %c144] : memref<4x416xbf16, #tpu.memory_space<vmem>>, vector<4x128xbf16>
    tpu.vector_store %arg9[%c0_9, %c144], %11 {strides = array<i32>} : memref<4x416xbf16, #tpu.memory_space<vmem>>, vector<4x128xbf16>,
    %c1_i32 = arith.constant 1 : i32
    %13 = arith.cmpi slt, %arg1, %c1_i32 : i32
    %14 = arith.extui %13 : i1 to i32
    %c0_i32_10 = arith.constant 0 : i32
    %15 = arith.cmpi ne, %14, %c0_i32_10 : i32
    scf.if %15 {
      %c0_42 = arith.constant 0 : index
      %c0_43 = arith.constant 0 : index
      %c0_44 = arith.constant 0 : index
      %c0_45 = arith.constant 0 : index
      %72 = vector.load %arg4[%c0_42, %c0_43, %c0_44, %c0_45] : memref<1x4x8x16xbf16, #tpu.memory_space<vmem>>, vector<1x4x8x16xbf16>
      %73 = vector.shape_cast %72 : vector<1x4x8x16xbf16> to vector<4x8x16xbf16>
      %74 = vector.extract_strided_slice %73 {offsets = [0, 0, 0], sizes = [4, 1, 16], strides = [1, 1, 1]} : vector<4x8x16xbf16> to vector<4x1x16xbf16>
      %75 = vector.shape_cast %74 : vector<4x1x16xbf16> to vector<4x16xbf16>
      %c0_46 = arith.constant 0 : index
      %c272 = arith.constant 272 : index
      %76 = vector.load %arg9[%c0_46, %c272] : memref<4x416xbf16, #tpu.memory_space<vmem>>, vector<4x16xbf16>
      tpu.vector_store %arg9[%c0_46, %c272], %75 {strides = array<i32>} : memref<4x416xbf16, #tpu.memory_space<vmem>>, vector<4x16xbf16>,
    } else {
    }
    %c1_i32_11 = arith.constant 1 : i32
    %16 = arith.cmpi eq, %arg1, %c1_i32_11 : i32
    %17 = arith.extui %16 : i1 to i32
    %c0_i32_12 = arith.constant 0 : i32
    %18 = arith.cmpi ne, %17, %c0_i32_12 : i32
    scf.if %18 {
      %cst_42 = arith.constant 0.000000e+00 : bf16
      %72 = vector.broadcast %cst_42 : bf16 to vector<4x16xbf16>
      %c0_43 = arith.constant 0 : index
      %c272 = arith.constant 272 : index
      %73 = vector.load %arg9[%c0_43, %c272] : memref<4x416xbf16, #tpu.memory_space<vmem>>, vector<4x16xbf16>
      tpu.vector_store %arg9[%c0_43, %c272], %72 {strides = array<i32>} : memref<4x416xbf16, #tpu.memory_space<vmem>>, vector<4x16xbf16>,
    } else {
    }
    %c0_13 = arith.constant 0 : index
    %c0_14 = arith.constant 0 : index
    %19 = vector.load %arg7[%c0_13, %c0_14] : memref<1x128xi32, #tpu.memory_space<vmem>>, vector<1x128xi32>
    %c0_i32_15 = arith.constant 0 : i32
    %20 = vector.broadcast %c0_i32_15 : i32 to vector<1x128xi32>
    %21 = arith.cmpi eq, %19, %20 : vector<1x128xi32>
    %c15_i32 = arith.constant 15 : i32
    %22 = vector.broadcast %c15_i32 : i32 to vector<1x128xi32>
    %23 = arith.cmpi eq, %19, %22 : vector<1x128xi32>
    %c0_16 = arith.constant 0 : index
    %c127 = arith.constant 127 : index
    %24 = vector.load %arg9[%c0_16, %c127] : memref<4x416xbf16, #tpu.memory_space<vmem>>, vector<4x128xbf16>
    %cst_17 = arith.constant 0.000000e+00 : bf16
    %25 = vector.broadcast %cst_17 : bf16 to vector<4x128xbf16>
    %26 = vector.shape_cast %21 : vector<1x128xi1> to vector<1x128xi1>
    %27 = vector.broadcast %26 : vector<1x128xi1> to vector<4x128xi1>
    %28 = arith.select %27, %25, %24 : vector<4x128xi1>, vector<4x128xbf16>
    %c0_18 = arith.constant 0 : index
    %c128 = arith.constant 128 : index
    %29 = vector.load %arg9[%c0_18, %c128] : memref<4x416xbf16, #tpu.memory_space<vmem>>, vector<4x128xbf16>
    %c0_19 = arith.constant 0 : index
    %c129 = arith.constant 129 : index
    %30 = vector.load %arg9[%c0_19, %c129] : memref<4x416xbf16, #tpu.memory_space<vmem>>, vector<4x128xbf16>
    %cst_20 = arith.constant 0.000000e+00 : bf16
    %31 = vector.broadcast %cst_20 : bf16 to vector<4x128xbf16>
    %32 = vector.shape_cast %23 : vector<1x128xi1> to vector<1x128xi1>
    %33 = vector.broadcast %32 : vector<1x128xi1> to vector<4x128xi1>
    %34 = arith.select %33, %31, %30 : vector<4x128xi1>, vector<4x128xbf16>
    %c0_21 = arith.constant 0 : index
    %c143 = arith.constant 143 : index
    %35 = vector.load %arg9[%c0_21, %c143] : memref<4x416xbf16, #tpu.memory_space<vmem>>, vector<4x128xbf16>
    %cst_22 = arith.constant 0.000000e+00 : bf16
    %36 = vector.broadcast %cst_22 : bf16 to vector<4x128xbf16>
    %37 = vector.shape_cast %21 : vector<1x128xi1> to vector<1x128xi1>
    %38 = vector.broadcast %37 : vector<1x128xi1> to vector<4x128xi1>
    %39 = arith.select %38, %36, %35 : vector<4x128xi1>, vector<4x128xbf16>
    %c0_23 = arith.constant 0 : index
    %c144_24 = arith.constant 144 : index
    %40 = vector.load %arg9[%c0_23, %c144_24] : memref<4x416xbf16, #tpu.memory_space<vmem>>, vector<4x128xbf16>
    %c0_25 = arith.constant 0 : index
    %c145 = arith.constant 145 : index
    %41 = vector.load %arg9[%c0_25, %c145] : memref<4x416xbf16, #tpu.memory_space<vmem>>, vector<4x128xbf16>
    %cst_26 = arith.constant 0.000000e+00 : bf16
    %42 = vector.broadcast %cst_26 : bf16 to vector<4x128xbf16>
    %43 = vector.shape_cast %23 : vector<1x128xi1> to vector<1x128xi1>
    %44 = vector.broadcast %43 : vector<1x128xi1> to vector<4x128xi1>
    %45 = arith.select %44, %42, %41 : vector<4x128xi1>, vector<4x128xbf16>
    %c0_27 = arith.constant 0 : index
    %c159 = arith.constant 159 : index
    %46 = vector.load %arg9[%c0_27, %c159] : memref<4x416xbf16, #tpu.memory_space<vmem>>, vector<4x128xbf16>
    %cst_28 = arith.constant 0.000000e+00 : bf16
    %47 = vector.broadcast %cst_28 : bf16 to vector<4x128xbf16>
    %48 = vector.shape_cast %21 : vector<1x128xi1> to vector<1x128xi1>
    %49 = vector.broadcast %48 : vector<1x128xi1> to vector<4x128xi1>
    %50 = arith.select %49, %47, %46 : vector<4x128xi1>, vector<4x128xbf16>
    %c0_29 = arith.constant 0 : index
    %c160 = arith.constant 160 : index
    %51 = vector.load %arg9[%c0_29, %c160] : memref<4x416xbf16, #tpu.memory_space<vmem>>, vector<4x128xbf16>
    %c0_30 = arith.constant 0 : index
    %c161 = arith.constant 161 : index
    %52 = vector.load %arg9[%c0_30, %c161] : memref<4x416xbf16, #tpu.memory_space<vmem>>, vector<4x128xbf16>
    %cst_31 = arith.constant 0.000000e+00 : bf16
    %53 = vector.broadcast %cst_31 : bf16 to vector<4x128xbf16>
    %54 = vector.shape_cast %23 : vector<1x128xi1> to vector<1x128xi1>
    %55 = vector.broadcast %54 : vector<1x128xi1> to vector<4x128xi1>
    %56 = arith.select %55, %53, %52 : vector<4x128xi1>, vector<4x128xbf16>
    %57 = tpu.concatenate %28, %29, %34, %39, %40, %45, %50, %51, %56 in 0 : vector<4x128xbf16>, vector<4x128xbf16>, vector<4x128xbf16>, vector<4x128xbf16>, vector<4x128xbf16>, vector<4x128xbf16>, vector<4x128xbf16>, vector<4x128xbf16>, vector<4x128xbf16> -> vector<36x128xbf16>
    %c0_32 = arith.constant 0 : index
    %c0_33 = arith.constant 0 : index
    %58 = vector.load %arg5[%c0_32, %c0_33] : memref<16x36xbf16, #tpu.memory_space<vmem>>, vector<16x36xbf16>
    %cst_34 = arith.constant dense<0.000000e+00> : vector<16x128xf32>
    %59 = tpu.matmul %58, %57, %cst_34 {dimension_numbers = #tpu.dot_dimension_numbers<[1], [0], [0], [1], [0, 0, 1, 1], [], []>} : vector<16x36xbf16>, vector<36x128xbf16>, vector<16x128xf32> -> vector<16x128xf32>
    %c0_35 = arith.constant 0 : index
    %c0_36 = arith.constant 0 : index
    %60 = vector.load %arg6[%c0_35, %c0_36] : memref<16x2xf32, #tpu.memory_space<vmem>>, vector<16x1xf32>
    %61 = vector.broadcast %60 : vector<16x1xf32> to vector<16x128xf32>
    %62 = arith.addf %59, %61 : vector<16x128xf32>
    %cst_37 = arith.constant 0.000000e+00 : f32
    %63 = vector.broadcast %cst_37 : f32 to vector<16x128xf32>
    %64 = arith.cmpf ogt, %62, %63 : vector<16x128xf32>
    %c0_38 = arith.constant 0 : index
    %c1 = arith.constant 1 : index
    %65 = vector.load %arg6[%c0_38, %c1] : memref<16x2xf32, #tpu.memory_space<vmem>>, vector<16x1xf32>
    %66 = vector.broadcast %65 : vector<16x1xf32> to vector<16x128xf32>
    %67 = arith.mulf %62, %66 : vector<16x128xf32>
    %68 = arith.select %64, %62, %67 : vector<16x128xi1>, vector<16x128xf32>
    %c0_39 = arith.constant 0 : index
    %c0_40 = arith.constant 0 : index
    %c0_41 = arith.constant 0 : index
    %69 = vector.load %arg8[%c0_39, %c0_40, %c0_41] : memref<1x16x128xf32, #tpu.memory_space<vmem>>, vector<1x16x128xf32>
    %70 = vector.shape_cast %69 : vector<1x16x128xf32> to vector<16x128xf32>
    %71 = vector.shape_cast %68 : vector<16x128xf32> to vector<1x16x128xf32>
    tpu.vector_store %arg8[%c0_39, %c0_40, %c0_41], %71 {strides = array<i32>} : memref<1x16x128xf32, #tpu.memory_space<vmem>>, vector<1x16x128xf32>,
    return
  }
  func.func @transform_0(%arg0: i32, %arg1: i32) -> (i32, i32, i32) {
    %c0_i32 = arith.constant 0 : i32
    %c0_i32_0 = arith.constant 0 : i32
    return %arg0, %c0_i32, %arg1 : i32, i32, i32
  }
  func.func @transform_1(%arg0: i32, %arg1: i32) -> (i32, i32, i32, i32) {
    %c1_i32 = arith.constant 1 : i32
    %0 = arith.muli %arg1, %c1_i32 : i32
    %c1_i32_0 = arith.constant 1 : i32
    %1 = arith.subi %0, %c1_i32_0 : i32
    %c0_i32 = arith.constant 0 : i32
    %2 = arith.maxsi %1, %c0_i32 : i32
    %c0_i32_1 = arith.constant 0 : i32
    %c0_i32_2 = arith.constant 0 : i32
    %c0_i32_3 = arith.constant 0 : i32
    return %arg0, %c0_i32_1, %2, %c0_i32_2 : i32, i32, i32, i32
  }
  func.func @transform_2(%arg0: i32, %arg1: i32) -> (i32, i32, i32, i32) {
    %c1_i32 = arith.constant 1 : i32
    %0 = arith.addi %arg1, %c1_i32 : i32
    %c1_i32_0 = arith.constant 1 : i32
    %1 = arith.muli %0, %c1_i32_0 : i32
    %c1_i32_1 = arith.constant 1 : i32
    %2 = arith.minsi %1, %c1_i32_1 : i32
    %c0_i32 = arith.constant 0 : i32
    %c0_i32_2 = arith.constant 0 : i32
    %c0_i32_3 = arith.constant 0 : i32
    return %arg0, %c0_i32, %2, %c0_i32_2 : i32, i32, i32, i32
  }
  func.func @transform_3(%arg0: i32, %arg1: i32) -> (i32, i32) {
    %c0_i32 = arith.constant 0 : i32
    %c0_i32_0 = arith.constant 0 : i32
    %c0_i32_1 = arith.constant 0 : i32
    return %c0_i32, %c0_i32_0 : i32, i32
  }
  func.func @transform_4(%arg0: i32, %arg1: i32) -> (i32, i32) {
    %c0_i32 = arith.constant 0 : i32
    %c0_i32_0 = arith.constant 0 : i32
    %c0_i32_1 = arith.constant 0 : i32
    return %c0_i32, %c0_i32_0 : i32, i32
  }
  func.func @transform_5(%arg0: i32, %arg1: i32) -> (i32, i32) {
    %c0_i32 = arith.constant 0 : i32
    %c0_i32_0 = arith.constant 0 : i32
    %c0_i32_1 = arith.constant 0 : i32
    return %c0_i32, %c0_i32_0 : i32, i32
  }
  func.func @transform_6(%arg0: i32, %arg1: i32) -> (i32, i32, i32) {
    %c0_i32 = arith.constant 0 : i32
    %c0_i32_0 = arith.constant 0 : i32
    return %arg0, %c0_i32, %arg1 : i32, i32, i32
  }
}

</mosaic_0001>

<llo_original>
// kernel: tpu_custom_call.1
$region0: #{tpu_custom_call.1}
  #allocation0 [shape = 'u32[]', space=smem, size = 0x4, offset = 0x4, fixed_abs, tag = 'smem constant byte address 0x4 - core index']
  #allocation1 [shape = 'u32[144,128]{1,0:T(1,128)}', space=vmem, size = 0x12000, scoped, tag = 'internal scratch']
  #allocation2 [shape = 'bf16[4,416]{1,0:T(4,128)(2,1)}', space=vmem, size = 0x1000, scoped, tag = 'scratch operand']
  %s0 = inlined_call_operand.vmem [shape: bf16[2,4,256], index: 0, kind: input, shape index: {}]
  %s1 = inlined_call_operand.hbm [shape: bf16[2,4,16,16], index: 1, kind: input, shape index: {}]
  %s2 = inlined_call_operand.hbm [shape: bf16[2,4,16,16], index: 2, kind: input, shape index: {}]
  %s3 = inlined_call_operand.vmem [shape: bf16[16,36], index: 3, kind: input, shape index: {}]
  %s4 = inlined_call_operand.vmem [shape: f32[16,2], index: 4, kind: input, shape index: {}]
  %s5 = inlined_call_operand.vmem [shape: s32[1,128], index: 5, kind: input, shape index: {}]
  %s6 = inlined_call_operand.hbm [shape: f32[2,16,256], index: 6, kind: output, shape index: {}]
  %s7 = sld [smem:[#allocation0]]
  $region81: #{tpu_custom_call.1} parent=0
    _
  %s9 = ssub.s32 1, %s7
  %s10 = scalar_select 0, %s9, %s7
  $region1: #{tpu_custom_call.1} parent=0
    #allocation3 [shape = 'u8[16384]{0}', space=vmem, size = 0x4000, scoped, tag = 'input window, operand 1']
    #allocation4 [shape = 's32[2]{0}', space=sflag, size = 0x8, scoped, tag = 'scoped memory for tpu_custom_call.1']
    #allocation5 [shape = 's32[2]{0}', space=sflag, size = 0x8, scoped, tag = 'scoped memory for tpu_custom_call.1']
    #allocation6 [shape = 'u8[16384]{0}', space=vmem, size = 0x4000, scoped, tag = 'input window, operand 2']
    #allocation7 [shape = 's32[2]{0}', space=sflag, size = 0x8, scoped, tag = 'scoped memory for tpu_custom_call.1']
    #allocation8 [shape = 'u8[16384]{0}', space=vmem, size = 0x4000, scoped, tag = 'output window, operand 0']
    %11 = vsyncpa [#allocation4], 0
    %s12 = scalar_lea.sflag [#allocation4], 1
    %13 = vsyncpa %s12, 0
    %14 = vsyncpa [#allocation7], 0
    %s15 = scalar_lea.sflag [#allocation7], 1
    %16 = vsyncpa %s15, 0
    %17 = vsyncpa [#allocation5], 0
    %s18 = scalar_lea.sflag [#allocation5], 1
    %19 = vsyncpa %s18, 0
    loop: start=0, step=1, limit=6
    $region2: #{tpu_custom_call.1} parent=1 // loop_pre_header
      _
    $region3: #{tpu_custom_call.1} parent=1 // loop_header
      %s21 = sphi 0, %s25
      %p22 = scmp.ge.s32.totalorder %s21, 6
      %s28 = sphi 0, %s40
      %s29 = sphi 0, %s36
      %s30 = sphi 0, %s28
      %s31 = sphi 0, %s29
      %s32 = sphi 0, %s30
      %s33 = sphi 0, %s31
      %s45 = sphi 0, %s47
      %s48 = sphi 0, %s45
      %s49 = sphi 0, %s48
      %s65 = sphi 0, %s49
      %s79 = sphi 0, %s81
      %s82 = sphi 0, %s79
      %s83 = sphi 0, %s82
      %s99 = sphi 0, %s83
      %s113 = sphi 0, %s115
      %s116 = sphi 0, %s113
      %s117 = sphi 0, %s116
      %s133 = sphi 0, %s117
      %s137 = sphi 0, %s137
      %s139 = sphi 0, %s137
      %s140 = sphi 0, %s139
      %s154 = sphi 0, %s140
      %s158 = sphi 0, %s158
      %s160 = sphi 0, %s158
      %s161 = sphi 0, %s160
      %s175 = sphi 0, %s161
      %s179 = sphi 0, %s179
      %s181 = sphi 0, %s179
      %s182 = sphi 0, %s181
      %s196 = sphi 0, %s182
      %s204 = sphi 0, %s206
      %s207 = sphi 0, %s204
      %s208 = sphi 0, %s207
      %s224 = sphi 0, %s208
    $region4: #{tpu_custom_call.1} parent=1 // loop_header_branch
      %24 = sbr.rel (%p22) target = $region8
    $region5: #{tpu_custom_call.1} parent=1 // loop_body
      %s26 = ssub.s32 %s21, 1
      %s27 = ssub.s32 %s21, 2
      %s34 = sadd.s32 1, %s29
      %p35 = scmp.ge.s32.totalorder %s34, 2
      %s36 = scalar_select %p35, 0, %s34
      %s37 = sadd.s32 1, %s28
      %s38 = scalar_select %p35, %s37, %s28
      %p39 = scmp.ge.s32.totalorder %s38, 2
      %s40 = scalar_select %p39, 0, %s38
      %s41 = ssub.s32 %s28, %s40
      %s42 = ssub.s32 %s29, %s36
      %s43 = sor.u32 %s41, %s42
      %p44 = scmp.eq.s32.totalorder %s43, 0
      %s46 = sadd.s32 %s45, 1
      %s47 = scalar_select %p44, %s45, %s46
      %p50 = pneg %p44
      %p51 = scmp.eq.s32.totalorder %s21, 3
      %p52 = por %p50, %p51
      %p53 = scmp.ne.s32.totalorder %s45, %s48
      %p54 = scmp.eq.s32.totalorder %s21, 0
      %p55 = por %p53, %p54
      %p56 = scmp.ne.s32.totalorder %s45, %s48
      %p57 = scmp.eq.s32.totalorder %s26, 3
      %p58 = por %p56, %p57
      %p59 = scmp.ne.s32.totalorder %s48, %s49
      %p60 = scmp.eq.s32.totalorder %s26, 0
      %p61 = por %p59, %p60
      %p62 = scmp.ne.s32.totalorder %s48, %s49
      %p63 = scmp.eq.s32.totalorder %s27, 3
      %p64 = por %p62, %p63
      %p66 = scmp.ne.s32.totalorder %s49, %s65
      %p67 = scmp.eq.s32.totalorder %s27, 0
      %p68 = por %p66, %p67
      %s69 = ssub.s32 %s29, 1
      %p70 = scmp.gt.s32.totalorder %s69, 0
      %s71 = scalar_select %p70, %s69, 0
      %s72 = ssub.s32 %s36, 1
      %p73 = scmp.gt.s32.totalorder %s72, 0
      %s74 = scalar_select %p73, %s72, 0
      %s75 = ssub.s32 %s28, %s40
      %s76 = ssub.s32 %s71, %s74
      %s77 = sor.u32 %s75, %s76
      %p78 = scmp.eq.s32.totalorder %s77, 0
      %s80 = sadd.s32 %s79, 1
      %s81 = scalar_select %p78, %s79, %s80
      %p84 = pneg %p78
      %p85 = scmp.eq.s32.totalorder %s21, 3
      %p86 = por %p84, %p85
      %p87 = scmp.ne.s32.totalorder %s79, %s82
      %p88 = scmp.eq.s32.totalorder %s21, 0
      %p89 = por %p87, %p88
      %p90 = scmp.ne.s32.totalorder %s79, %s82
      %p91 = scmp.eq.s32.totalorder %s26, 3
      %p92 = por %p90, %p91
      %p93 = scmp.ne.s32.totalorder %s82, %s83
      %p94 = scmp.eq.s32.totalorder %s26, 0
      %p95 = por %p93, %p94
      %p96 = scmp.ne.s32.totalorder %s82, %s83
      %p97 = scmp.eq.s32.totalorder %s27, 3
      %p98 = por %p96, %p97
      %p100 = scmp.ne.s32.totalorder %s83, %s99
      %p101 = scmp.eq.s32.totalorder %s27, 0
      %p102 = por %p100, %p101
      %s103 = sadd.s32 %s29, 1
      %p104 = scmp.lt.s32.totalorder %s103, 1
      %s105 = scalar_select %p104, %s103, 1
      %s106 = sadd.s32 %s36, 1
      %p107 = scmp.lt.s32.totalorder %s106, 1
      %s108 = scalar_select %p107, %s106, 1
      %s109 = ssub.s32 %s28, %s40
      %s110 = ssub.s32 %s105, %s108
      %s111 = sor.u32 %s109, %s110
      %p112 = scmp.eq.s32.totalorder %s111, 0
      %s114 = sadd.s32 %s113, 1
      %s115 = scalar_select %p112, %s113, %s114
      %p118 = pneg %p112
      %p119 = scmp.eq.s32.totalorder %s21, 3
      %p120 = por %p118, %p119
      %p121 = scmp.ne.s32.totalorder %s113, %s116
      %p122 = scmp.eq.s32.totalorder %s21, 0
      %p123 = por %p121, %p122
      %p124 = scmp.ne.s32.totalorder %s113, %s116
      %p125 = scmp.eq.s32.totalorder %s26, 3
      %p126 = por %p124, %p125
      %p127 = scmp.ne.s32.totalorder %s116, %s117
      %p128 = scmp.eq.s32.totalorder %s26, 0
      %p129 = por %p127, %p128
      %p130 = scmp.ne.s32.totalorder %s116, %s117
      %p131 = scmp.eq.s32.totalorder %s27, 3
      %p132 = por %p130, %p131
      %p134 = scmp.ne.s32.totalorder %s117, %s133
      %p135 = scmp.eq.s32.totalorder %s27, 0
      %p136 = por %p134, %p135
      %s138 = sadd.s32 %s137, 1
      %p141 = scmp.eq.s32.totalorder %s21, 3
      %p142 = scmp.ne.s32.totalorder %s137, %s139
      %p143 = scmp.eq.s32.totalorder %s21, 0
      %p144 = por %p142, %p143
      %p145 = scmp.ne.s32.totalorder %s137, %s139
      %p146 = scmp.eq.s32.totalorder %s26, 3
      %p147 = por %p145, %p146
      %p148 = scmp.ne.s32.totalorder %s139, %s140
      %p149 = scmp.eq.s32.totalorder %s26, 0
      %p150 = por %p148, %p149
      %p151 = scmp.ne.s32.totalorder %s139, %s140
      %p152 = scmp.eq.s32.totalorder %s27, 3
      %p153 = por %p151, %p152
      %p155 = scmp.ne.s32.totalorder %s140, %s154
      %p156 = scmp.eq.s32.totalorder %s27, 0
      %p157 = por %p155, %p156
      %s159 = sadd.s32 %s158, 1
      %p162 = scmp.eq.s32.totalorder %s21, 3
      %p163 = scmp.ne.s32.totalorder %s158, %s160
      %p164 = scmp.eq.s32.totalorder %s21, 0
      %p165 = por %p163, %p164
      %p166 = scmp.ne.s32.totalorder %s158, %s160
      %p167 = scmp.eq.s32.totalorder %s26, 3
      %p168 = por %p166, %p167
      %p169 = scmp.ne.s32.totalorder %s160, %s161
      %p170 = scmp.eq.s32.totalorder %s26, 0
      %p171 = por %p169, %p170
      %p172 = scmp.ne.s32.totalorder %s160, %s161
      %p173 = scmp.eq.s32.totalorder %s27, 3
      %p174 = por %p172, %p173
      %p176 = scmp.ne.s32.totalorder %s161, %s175
      %p177 = scmp.eq.s32.totalorder %s27, 0
      %p178 = por %p176, %p177
      %s180 = sadd.s32 %s179, 1
      %p183 = scmp.eq.s32.totalorder %s21, 3
      %p184 = scmp.ne.s32.totalorder %s179, %s181
      %p185 = scmp.eq.s32.totalorder %s21, 0
      %p186 = por %p184, %p185
      %p187 = scmp.ne.s32.totalorder %s179, %s181
      %p188 = scmp.eq.s32.totalorder %s26, 3
      %p189 = por %p187, %p188
      %p190 = scmp.ne.s32.totalorder %s181, %s182
      %p191 = scmp.eq.s32.totalorder %s26, 0
      %p192 = por %p190, %p191
      %p193 = scmp.ne.s32.totalorder %s181, %s182
      %p194 = scmp.eq.s32.totalorder %s27, 3
      %p195 = por %p193, %p194
      %p197 = scmp.ne.s32.totalorder %s182, %s196
      %p198 = scmp.eq.s32.totalorder %s27, 0
      %p199 = por %p197, %p198
      %s200 = ssub.s32 %s28, %s40
      %s201 = ssub.s32 %s29, %s36
      %s202 = sor.u32 %s200, %s201
      %p203 = scmp.eq.s32.totalorder %s202, 0
      %s205 = sadd.s32 %s204, 1
      %s206 = scalar_select %p203, %s204, %s205
      %p209 = pneg %p203
      %p210 = scmp.eq.s32.totalorder %s21, 3
      %p211 = por %p209, %p210
      %p212 = scmp.ne.s32.totalorder %s204, %s207
      %p213 = scmp.eq.s32.totalorder %s21, 0
      %p214 = por %p212, %p213
      %p215 = scmp.ne.s32.totalorder %s204, %s207
      %p216 = scmp.eq.s32.totalorder %s26, 3
      %p217 = por %p215, %p216
      %p218 = scmp.ne.s32.totalorder %s207, %s208
      %p219 = scmp.eq.s32.totalorder %s26, 0
      %p220 = por %p218, %p219
      %p221 = scmp.ne.s32.totalorder %s207, %s208
      %p222 = scmp.eq.s32.totalorder %s27, 3
      %p223 = por %p221, %p222
      %p225 = scmp.ne.s32.totalorder %s208, %s224
      %p226 = scmp.eq.s32.totalorder %s27, 0
      %p227 = por %p225, %p226
      %p228 = scmp.le.s32.totalorder 1, %s21
      %p229 = scmp.lt.s32.totalorder %s21, 5
      %p230 = pnand %p228, %p229
      %p231 = pneg %p230
      // Predicated region
      $region9: #{tpu_custom_call.1} parent=5 // pred_check
        _
      $region10: #{tpu_custom_call.1} parent=5 // pred_check_branch
        %233 = sbr.rel (%p230) target = $region12
      $region11: #{tpu_custom_call.1} parent=5 // pred_region
        %s234 = ssub.s32 %s21, 1
        // Predicated region
        $region13: #{tpu_custom_call.1} parent=11 // pred_check
          %p235 = pneg %p150
        $region14: #{tpu_custom_call.1} parent=11 // pred_check_branch
          %237 = sbr.rel (%p235) target = $region16
        $region15: #{tpu_custom_call.1} parent=11 // pred_region
          _
        $region16: #{tpu_custom_call.1} parent=11 // pred_fallthru
          _
        // Predicated region
        $region17: #{tpu_custom_call.1} parent=11 // pred_check
          %p238 = pneg %p171
        $region18: #{tpu_custom_call.1} parent=11 // pred_check_branch
          %240 = sbr.rel (%p238) target = $region20
        $region19: #{tpu_custom_call.1} parent=11 // pred_region
          _
        $region20: #{tpu_custom_call.1} parent=11 // pred_fallthru
          _
        // Predicated region
        $region21: #{tpu_custom_call.1} parent=11 // pred_check
          %p241 = pneg %p192
        $region22: #{tpu_custom_call.1} parent=11 // pred_check_branch
          %243 = sbr.rel (%p241) target = $region24
        $region23: #{tpu_custom_call.1} parent=11 // pred_region
          _
        $region24: #{tpu_custom_call.1} parent=11 // pred_fallthru
          _
      $region12: #{tpu_custom_call.1} parent=5 // pred_fallthru
        _
      %p244 = scmp.lt.s32.totalorder %s21, 4
      // Predicated region
      $region25: #{tpu_custom_call.1} parent=5 // pred_check
        %p245 = pneg %p244
      $region26: #{tpu_custom_call.1} parent=5 // pred_check_branch
        %247 = sbr.rel (%p245) target = $region28
      $region27: #{tpu_custom_call.1} parent=5 // pred_region
        // Predicated region
        $region29: #{tpu_custom_call.1} parent=27 // pred_check
          %p248 = pneg %p55
        $region30: #{tpu_custom_call.1} parent=27 // pred_check_branch
          %250 = sbr.rel (%p248) target = $region32
        $region31: #{tpu_custom_call.1} parent=27 // pred_region
          %p251 = scmp.lt.s32.totalorder %s28, 1
          %s252 = scalar_select %p251, %s28, 1
          %p253 = scmp.lt.s32.totalorder %s29, 1
          %s254 = scalar_select %p253, %s29, 1
          %s255 = smul.addr %s252, 2
          %s256 = sadd.s32 %s254, %s255
          %s257 = smul.addr %s256, 2
          %s258 = scalar_lea.vmem %s0, %s257
        $region32: #{tpu_custom_call.1} parent=27 // pred_fallthru
          _
        // Predicated region
        $region33: #{tpu_custom_call.1} parent=27 // pred_check
          %p259 = pneg %p89
        $region34: #{tpu_custom_call.1} parent=27 // pred_check_branch
          %261 = sbr.rel (%p259) target = $region36
        $region35: #{tpu_custom_call.1} parent=27 // pred_region
          %s262 = sand.u32 %s79, 1
          %s263 = scalar_lea.sflag [#allocation4], %s262
          %s264 = sand.u32 %s79, 1
          %s265 = smul.addr %s264, 16
          %s266 = scalar_lea.vmem [#allocation3], %s265
          %s267 = ssub.s32 %s29, 1
          %p268 = scmp.gt.s32.totalorder %s267, 0
          %s269 = scalar_select %p268, %s267, 0
          %s271 = ssub.s32 256, 256
          %272 = vsyncadd %s263, %s271
          %s273 = smul.addr %s28, 8
          %s274 = sadd.s32 %s269, %s273
          %s275 = smul.addr %s274, 64
          %s276 = scalar_lea.hbm %s1, %s275
          %s277 = sshll.u32 %s266, 4
          %s278 = int_to_ptr.vmem [resolvable:$true] %s277
          %283 = dma.hbm_to_vmem [thread:$0]  %s276, 256, %s278, %s263, 128, 64, 4
        $region36: #{tpu_custom_call.1} parent=27 // pred_fallthru
          _
        // Predicated region
        $region37: #{tpu_custom_call.1} parent=27 // pred_check
          %p284 = pneg %p123
        $region38: #{tpu_custom_call.1} parent=27 // pred_check_branch
          %286 = sbr.rel (%p284) target = $region40
        $region39: #{tpu_custom_call.1} parent=27 // pred_region
          %s287 = sand.u32 %s113, 1
          %s288 = scalar_lea.sflag [#allocation7], %s287
          %s289 = sand.u32 %s113, 1
          %s290 = smul.addr %s289, 16
          %s291 = scalar_lea.vmem [#allocation6], %s290
          %s292 = sadd.s32 %s29, 1
          %p293 = scmp.lt.s32.totalorder %s292, 1
          %s294 = scalar_select %p293, %s292, 1
          %s296 = ssub.s32 256, 256
          %297 = vsyncadd %s288, %s296
          %s298 = smul.addr %s28, 8
          %s299 = sadd.s32 %s294, %s298
          %s300 = smul.addr %s299, 64
          %s301 = scalar_lea.hbm %s2, %s300
          %s302 = sshll.u32 %s291, 4
          %s303 = int_to_ptr.vmem [resolvable:$true] %s302
          %308 = dma.hbm_to_vmem [thread:$0]  %s301, 256, %s303, %s288, 128, 64, 4
        $region40: #{tpu_custom_call.1} parent=27 // pred_fallthru
          _
      $region28: #{tpu_custom_call.1} parent=5 // pred_fallthru
        _
      %p309 = scmp.le.s32.totalorder 1, %s21
      %p310 = scmp.lt.s32.totalorder %s21, 5
      %p311 = pnand %p309, %p310
      %p312 = pneg %p311
      // Predicated region
      $region41: #{tpu_custom_call.1} parent=5 // pred_check
        _
      $region42: #{tpu_custom_call.1} parent=5 // pred_check_branch
        %314 = sbr.rel (%p311) target = $region44
      $region43: #{tpu_custom_call.1} parent=5 // pred_region
        %s315 = ssub.s32 %s21, 1
        %s316 = sand.u32 %s82, 1
        %s317 = scalar_lea.sflag [#allocation4], %s316
        %s318 = sand.u32 %s82, 1
        %s319 = smul.addr %s318, 16
        %s320 = scalar_lea.vmem [#allocation3], %s319
        // Predicated region
        $region45: #{tpu_custom_call.1} parent=43 // pred_check
          %p321 = pneg %p95
        $region46: #{tpu_custom_call.1} parent=43 // pred_check_branch
          %323 = sbr.rel (%p321) target = $region48
        $region47: #{tpu_custom_call.1} parent=43 // pred_region
          %324 = dma.done %s317, 256
        $region48: #{tpu_custom_call.1} parent=43 // pred_fallthru
          _
        %s325 = sand.u32 %s116, 1
        %s326 = scalar_lea.sflag [#allocation7], %s325
        %s327 = sand.u32 %s116, 1
        %s328 = smul.addr %s327, 16
        %s329 = scalar_lea.vmem [#allocation6], %s328
        // Predicated region
        $region49: #{tpu_custom_call.1} parent=43 // pred_check
          %p330 = pneg %p129
        $region50: #{tpu_custom_call.1} parent=43 // pred_check_branch
          %332 = sbr.rel (%p330) target = $region52
        $region51: #{tpu_custom_call.1} parent=43 // pred_region
          %333 = dma.done %s326, 256
        $region52: #{tpu_custom_call.1} parent=43 // pred_fallthru
          _
        %p334 = scmp.lt.s32.totalorder %s30, 1
        %s335 = scalar_select %p334, %s30, 1
        %p336 = scmp.lt.s32.totalorder %s31, 1
        %s337 = scalar_select %p336, %s31, 1
        %s338 = smul.addr %s335, 2
        %s339 = sadd.s32 %s337, %s338
        %s340 = smul.addr %s339, 2
        %s341 = scalar_lea.vmem %s0, %s340
        %p342 = pneg %p61
        %p343 = pneg %p58
        %s344 = sand.u32 %s82, 1
        %s345 = scalar_lea.sflag [#allocation4], %s344
        %s346 = sand.u32 %s82, 1
        %s347 = smul.addr %s346, 16
        %s348 = scalar_lea.vmem [#allocation3], %s347
        %p349 = pneg %p95
        %p350 = pneg %p92
        %s351 = sand.u32 %s116, 1
        %s352 = scalar_lea.sflag [#allocation7], %s351
        %s353 = sand.u32 %s116, 1
        %s354 = smul.addr %s353, 16
        %s355 = scalar_lea.vmem [#allocation6], %s354
        %p356 = pneg %p129
        %p357 = pneg %p126
        %p358 = pneg %p150
        %p359 = pneg %p147
        %p360 = pneg %p171
        %p361 = pneg %p168
        %p362 = pneg %p192
        %p363 = pneg %p189
        %p364 = pneg %p220
        %p365 = pneg %p217
        %s366 = sand.u32 %s207, 1
        %s367 = scalar_lea.sflag [#allocation5], %s366
        %s368 = sand.u32 %s207, 1
        %s369 = smul.addr %s368, 16
        %s370 = scalar_lea.vmem [#allocation8], %s369
        %p371 = scmp.lt.s32.totalorder %s30, 1
        %s372 = scalar_select %p371, %s30, 1
        %p373 = scmp.lt.s32.totalorder %s31, 1
        %s374 = scalar_select %p373, %s31, 1
        %s375 = smul.addr %s372, 2
        %s376 = sadd.s32 %s374, %s375
        %s377 = smul.addr %s376, 2
        %s378 = scalar_lea.vmem %s0, %s377
        %s379 = ssub.s32 %s31, 1
        %p380 = scmp.gt.s32.totalorder %s379, 0
        %s381 = scalar_select %p380, %s379, 0
        %s382 = sadd.s32 %s31, 1
        %p383 = scmp.lt.s32.totalorder %s382, 1
        %s384 = scalar_select %p383, %s382, 1
        %388 = vst [vmem:[#allocation2] sm:$0x3] 0
        %vm389 = vcmask 1041664
        %vm390 = vcmask 257026
        %vm391 = vmor %vm390, %vm389
        %392 = vst.msk [vmem:[#allocation2 + $0x4] sm:$0xf] %vm391, 0
        %p393 = scmp.gt.s32.totalorder %s31, 0
        // Predicated region
        $region53: #{tpu_custom_call.1} parent=43 // pred_check
          %p394 = pneg %p393
        $region54: #{tpu_custom_call.1} parent=43 // pred_check_branch
          %396 = sbr.rel (%p394) target = $region56
        $region55: #{tpu_custom_call.1} parent=43 // pred_region
          %v397 = vld [vmem:[%s320] sm:$0xf]
          %v398 = vld [vmem:[%s320 + $0x4] sm:$0xf]
          %v399 = vld [vmem:[%s320 + $0x8] sm:$0xf]
          %v400 = vld [vmem:[%s320 + $0xc] sm:$0xf]
          %v406 = vunpack.c.l.s4 1983009808
          %v407 = vunpack.c.0.s8 %v406
          %v408 = vlaneseq
          %v409 = vshrl.u32 %v408, 7
          %v410 = vsub.s32 %v407, %v409
          %v411 = vrot.slane %v397, %v410
          %v412 = vcombine.high %v411, %v411
          %v414 = vunpack.c.l.s4 1983009808
          %v415 = vunpack.c.0.s8 %v414
          %v416 = vlaneseq
          %v417 = vshrl.u32 %v416, 7
          %v418 = vsub.s32 %v415, %v417
          %v419 = vrot.slane %v398, %v418
          %v420 = vcombine.high %v419, %v419
          %v422 = vunpack.c.l.s4 1983009808
          %v423 = vunpack.c.0.s8 %v422
          %v424 = vlaneseq
          %v425 = vshrl.u32 %v424, 7
          %v426 = vsub.s32 %v423, %v425
          %v427 = vrot.slane %v399, %v426
          %v428 = vcombine.high %v427, %v427
          %v430 = vunpack.c.l.s4 1983009808
          %v431 = vunpack.c.0.s8 %v430
          %v432 = vlaneseq
          %v433 = vshrl.u32 %v432, 7
          %v434 = vsub.s32 %v431, %v433
          %v435 = vrot.slane %v400, %v434
          %v436 = vcombine.high %v435, %v435
          %v438 = vunpack.c.l.s4 1983009808
          %v439 = vunpack.c.0.s8 %v438
          %v440 = vlaneseq
          %v441 = vshrl.u32 %v440, 7
          %v442 = vsub.s32 %v439, %v441
          %v443 = vrot.slane %v412, %v442
          %v445 = vunpack.c.l.s4 1983009808
          %v446 = vunpack.c.0.s8 %v445
          %v447 = vlaneseq
          %v448 = vshrl.u32 %v447, 7
          %v449 = vsub.s32 %v446, %v448
          %v450 = vrot.slane %v420, %v449
          %v452 = vunpack.c.l.s4 1983009808
          %v453 = vunpack.c.0.s8 %v452
          %v454 = vlaneseq
          %v455 = vshrl.u32 %v454, 7
          %v456 = vsub.s32 %v453, %v455
          %v457 = vrot.slane %v428, %v456
          %v459 = vunpack.c.l.s4 1983009808
          %v460 = vunpack.c.0.s8 %v459
          %v461 = vlaneseq
          %v462 = vshrl.u32 %v461, 7
          %v463 = vsub.s32 %v460, %v462
          %v464 = vrot.slane %v436, %v463
          %v465 = vunpack.c.l.b16 %v443
          %v466 = vunpack.c.l.b16 %v450
          %v467 = vunpack.c.l.b16 %v457
          %v468 = vunpack.c.l.b16 %v464
          %v469 = vrot.slane %v465, 3
          %v470 = vrot.slane %v466, 2
          %vm471 = vcmask 1041409
          %v472 = vsel %vm471, %v470, %v469
          %v473 = vrot.slane %v467, 1
          %vm474 = vcmask 1042434
          %v475 = vsel %vm474, %v473, %v472
          %vm476 = vcmask 1043459
          %v477 = vsel %vm476, %v468, %v475
          %v478 = vpack.c.b16 %v477, %v477
          %v480 = vunpack.c.l.s4 1983009808
          %v481 = vunpack.c.0.s8 %v480
          %v482 = vlaneseq
          %v483 = vshrl.u32 %v482, 7
          %v484 = vsub.s32 %v481, %v483
          %v485 = vrot.slane %v478, %v484
          %vm487 = vcmask 123904
          %488 = vst.msk [vmem:[#allocation2 + $0x2] sm:$0x3] %vm487, %v485
        $region56: #{tpu_custom_call.1} parent=43 // pred_fallthru
          _
        %p489 = scmp.eq.s32.totalorder %s31, 0
        // Predicated region
        $region57: #{tpu_custom_call.1} parent=43 // pred_check
          %p490 = pneg %p489
        $region58: #{tpu_custom_call.1} parent=43 // pred_check_branch
          %492 = sbr.rel (%p490) target = $region60
        $region59: #{tpu_custom_call.1} parent=43 // pred_region
          %vm493 = vcmask 123904
          %494 = vst.msk [vmem:[#allocation2 + $0x2] sm:$0x3] %vm493, 0
        $region60: #{tpu_custom_call.1} parent=43 // pred_fallthru
          _
        %v495 = vld [vmem:[%s378] sm:$0x3]
        %497 = vrot.lane.b32.xlu0 %v495, 16
        %v498 = vpop.permute.xlu0 %497
        %v499 = vrot.slane %v498, 6
        %vm500 = vcmask 130048
        %v501 = vsel %vm500, %v499, %v498
        %vm503 = vcmask 1041536
        %vm504 = vcmask 125954
        %vm505 = vmor %vm504, %vm503
        %506 = vst.msk [vmem:[#allocation2 + $0x2] sm:$0xf] %vm505, %v501
        %p507 = scmp.lt.s32.totalorder %s31, 1
        // Predicated region
        $region61: #{tpu_custom_call.1} parent=43 // pred_check
          %p508 = pneg %p507
        $region62: #{tpu_custom_call.1} parent=43 // pred_check_branch
          %510 = sbr.rel (%p508) target = $region64
        $region63: #{tpu_custom_call.1} parent=43 // pred_region
          %v511 = vld [vmem:[%s329] sm:$0xf]
          %v512 = vld [vmem:[%s329 + $0x4] sm:$0xf]
          %v513 = vld [vmem:[%s329 + $0x8] sm:$0xf]
          %v514 = vld [vmem:[%s329 + $0xc] sm:$0xf]
          %v520 = vunpack.c.l.s4 1983009808
          %v521 = vunpack.c.0.s8 %v520
          %v522 = vlaneseq
          %v523 = vshrl.u32 %v522, 7
          %v524 = vsub.s32 %v521, %v523
          %v525 = vrot.slane %v511, %v524
          %v527 = vunpack.c.l.s4 1983009808
          %v528 = vunpack.c.0.s8 %v527
          %v529 = vlaneseq
          %v530 = vshrl.u32 %v529, 7
          %v531 = vsub.s32 %v528, %v530
          %v532 = vrot.slane %v512, %v531
          %v534 = vunpack.c.l.s4 1983009808
          %v535 = vunpack.c.0.s8 %v534
          %v536 = vlaneseq
          %v537 = vshrl.u32 %v536, 7
          %v538 = vsub.s32 %v535, %v537
          %v539 = vrot.slane %v513, %v538
          %v541 = vunpack.c.l.s4 1983009808
          %v542 = vunpack.c.0.s8 %v541
          %v543 = vlaneseq
          %v544 = vshrl.u32 %v543, 7
          %v545 = vsub.s32 %v542, %v544
          %v546 = vrot.slane %v514, %v545
          %v548 = vunpack.c.l.s4 1983009808
          %v549 = vunpack.c.0.s8 %v548
          %v550 = vlaneseq
          %v551 = vshrl.u32 %v550, 7
          %v552 = vsub.s32 %v549, %v551
          %v553 = vrot.slane %v525, %v552
          %v555 = vunpack.c.l.s4 1983009808
          %v556 = vunpack.c.0.s8 %v555
          %v557 = vlaneseq
          %v558 = vshrl.u32 %v557, 7
          %v559 = vsub.s32 %v556, %v558
          %v560 = vrot.slane %v532, %v559
          %v562 = vunpack.c.l.s4 1983009808
          %v563 = vunpack.c.0.s8 %v562
          %v564 = vlaneseq
          %v565 = vshrl.u32 %v564, 7
          %v566 = vsub.s32 %v563, %v565
          %v567 = vrot.slane %v539, %v566
          %v569 = vunpack.c.l.s4 1983009808
          %v570 = vunpack.c.0.s8 %v569
          %v571 = vlaneseq
          %v572 = vshrl.u32 %v571, 7
          %v573 = vsub.s32 %v570, %v572
          %v574 = vrot.slane %v546, %v573
          %v575 = vunpack.c.l.b16 %v553
          %v576 = vunpack.c.l.b16 %v560
          %v577 = vunpack.c.l.b16 %v567
          %v578 = vunpack.c.l.b16 %v574
          %v579 = vrot.slane %v576, 7
          %vm580 = vcmask 1041409
          %v581 = vsel %vm580, %v579, %v575
          %v582 = vrot.slane %v577, 6
          %vm583 = vcmask 1042434
          %v584 = vsel %vm583, %v582, %v581
          %v585 = vrot.slane %v578, 5
          %vm586 = vcmask 1043459
          %v587 = vsel %vm586, %v585, %v584
          %v588 = vpack.c.b16 %v587, %v587
          %v590 = vunpack.c.l.s4 1983009808
          %v591 = vunpack.c.0.s8 %v590
          %v592 = vlaneseq
          %v593 = vshrl.u32 %v592, 7
          %v594 = vsub.s32 %v591, %v593
          %v595 = vrot.slane %v588, %v594
          %596 = vrot.lane.b32.xlu0 %v595, 16
          %v597 = vpop.permute.xlu0 %596
          %vm599 = vcmask 255104
          %600 = vst.msk [vmem:[#allocation2 + $0x4] sm:$0x3] %vm599, %v597
        $region64: #{tpu_custom_call.1} parent=43 // pred_fallthru
          _
        %p601 = scmp.eq.s32.totalorder %s31, 1
        // Predicated region
        $region65: #{tpu_custom_call.1} parent=43 // pred_check
          %p602 = pneg %p601
        $region66: #{tpu_custom_call.1} parent=43 // pred_check_branch
          %604 = sbr.rel (%p602) target = $region68
        $region67: #{tpu_custom_call.1} parent=43 // pred_region
          %vm605 = vcmask 255104
          %606 = vst.msk [vmem:[#allocation2 + $0x4] sm:$0x3] %vm605, 0
        $region68: #{tpu_custom_call.1} parent=43 // pred_fallthru
          _
        %v607 = vld [vmem:[%s5] sm:$0x1]
        %vm608 = vcmp.eq.s32.totalorder %v607, 0
        %vm609 = vcmp.eq.s32.totalorder %v607, 15
        %v610 = vld [vmem:[#allocation2] sm:$0xf]
        %v611 = vsel %vm608, 1, 0
        %v612 = vlaneseq
        %v613 = vshrl.u32 %v612, 7
        %v614 = vsub.s32 0, %v613
        %v615 = vrot.slane %v611, %v614
        %vm616 = vcmp.eq.s32.totalorder %v615, 1
        %v617 = vsel %vm616, 1, 0
        %v618 = vpack.c.b16 %v617, %v617
        %vm619 = vcmp.ne.s16.totalorder %v618, 0
        %v620 = vsel %vm619, 65537, 0
        %621 = vrot.lane.b32.xlu0 %v620, 127
        %v622 = vpop.permute.xlu0 %621
        %v623 = vrot.slane %v622, 6
        %vm624 = vcmask 1039360
        %v625 = vsel %vm624, %v623, %v622
        %vm626 = vcmp.ne.s16.totalorder %v625, 0
        %v627 = vsel %vm626, 0, %v610
        %v628 = vld [vmem:[#allocation2 + $0x2] sm:$0x3]
        %v629 = vld [vmem:[#allocation2 + $0x2] sm:$0xf]
        %v630 = vsel %vm609, 1, 0
        %v631 = vlaneseq
        %v632 = vshrl.u32 %v631, 7
        %v633 = vsub.s32 0, %v632
        %v634 = vrot.slane %v630, %v633
        %vm635 = vcmp.eq.s32.totalorder %v634, 1
        %v636 = vsel %vm635, 1, 0
        %v637 = vpack.c.b16 %v636, %v636
        %vm638 = vcmp.ne.s16.totalorder %v637, 0
        %v639 = vsel %vm638, 65537, 0
        %640 = vrot.lane.b32.xlu0 %v639, 1
        %v641 = vpop.permute.xlu0 %640
        %v642 = vrot.slane %v641, 6
        %vm643 = vcmask 7168
        %v644 = vsel %vm643, %v642, %v641
        %vm645 = vcmp.ne.s16.totalorder %v644, 0
        %v646 = vsel %vm645, 0, %v629
        %647 = vrot.lane.b32.xlu0 %v620, 15
        %v648 = vpop.permute.xlu0 %647
        %v649 = vrot.slane %v648, 6
        %vm650 = vcmask 121856
        %v651 = vsel %vm650, %v649, %v648
        %vm652 = vcmp.ne.s16.totalorder %v651, 0
        %v653 = vsel %vm652, 0, %v629
        %654 = vrot.lane.b32.xlu0 %v639, 17
        %v655 = vpop.permute.xlu0 %654
        %v656 = vrot.slane %v655, 6
        %vm657 = vcmask 138240
        %v658 = vsel %vm657, %v656, %v655
        %vm659 = vcmp.ne.s16.totalorder %v658, 0
        %v660 = vsel %vm659, 0, %v629
        %661 = vrot.lane.b32.xlu0 %v620, 31
        %v662 = vpop.permute.xlu0 %661
        %v663 = vrot.slane %v662, 6
        %vm664 = vcmask 252928
        %v665 = vsel %vm664, %v663, %v662
        %vm666 = vcmp.ne.s16.totalorder %v665, 0
        %v667 = vsel %vm666, 0, %v629
        %668 = vrot.lane.b32.xlu0 %v639, 33
        %v669 = vpop.permute.xlu0 %668
        %v670 = vrot.slane %v669, 6
        %vm671 = vcmask 269312
        %v672 = vsel %vm671, %v670, %v669
        %vm673 = vcmp.ne.s16.totalorder %v672, 0
        %v674 = vsel %vm673, 0, %v629
        %v677 = vunpack.c.l.s4 1983009808
        %v678 = vunpack.c.0.s8 %v677
        %v679 = vlaneseq
        %v680 = vshrl.u32 %v679, 7
        %v681 = vsub.s32 %v678, %v680
        %v682 = vrot.slane %v627, %v681
        %v683 = vcombine.high %v682, %v682
        %v685 = vcombine.low %v628, %v628
        %v687 = vunpack.c.l.s4 1983009808
        %v688 = vunpack.c.0.s8 %v687
        %v689 = vlaneseq
        %v690 = vshrl.u32 %v689, 7
        %v691 = vsub.s32 %v688, %v690
        %v692 = vrot.slane %v685, %v691
        %693 = vrot.lane.b32.xlu0 %v692, 127
        %v694 = vpop.permute.xlu0 %693
        %v697 = vunpack.c.l.s4 1983009808
        %v698 = vunpack.c.0.s8 %v697
        %v699 = vlaneseq
        %v700 = vshrl.u32 %v699, 7
        %v701 = vsub.s32 %v698, %v700
        %v702 = vrot.slane %v646, %v701
        %v703 = vcombine.low %v702, %v702
        %704 = vrot.lane.b32.xlu0 %v703, 126
        %v705 = vpop.permute.xlu0 %704
        %706 = vrot.lane.b32.xlu0 %v702, 126
        %v707 = vpop.permute.xlu0 %706
        %vm708 = vcmask 1031168
        %v709 = vsel %vm708, %v705, %v707
        %v711 = vcombine.low %v653, %v653
        %v713 = vunpack.c.l.s4 1983009808
        %v714 = vunpack.c.0.s8 %v713
        %v715 = vlaneseq
        %v716 = vshrl.u32 %v715, 7
        %v717 = vsub.s32 %v714, %v716
        %v718 = vrot.slane %v711, %v717
        %v719 = vcombine.low %v718, %v718
        %720 = vrot.lane.b32.xlu0 %v719, 112
        %v721 = vpop.permute.xlu0 %720
        %722 = vrot.lane.b32.xlu0 %v718, 112
        %v723 = vpop.permute.xlu0 %722
        %vm724 = vcmask 916480
        %v725 = vsel %vm724, %v721, %v723
        %v728 = vunpack.c.l.s4 1983009808
        %v729 = vunpack.c.0.s8 %v728
        %v730 = vlaneseq
        %v731 = vshrl.u32 %v730, 7
        %v732 = vsub.s32 %v729, %v731
        %v733 = vrot.slane %v629, %v732
        %v734 = vcombine.high %v733, %v733
        %735 = vrot.lane.b32.xlu0 %v733, 111
        %v736 = vpop.permute.xlu0 %735
        %737 = vrot.lane.b32.xlu0 %v734, 111
        %v738 = vpop.permute.xlu0 %737
        %vm739 = vcmask 908288
        %v740 = vsel %vm739, %v736, %v738
        %v742 = vcombine.low %v660, %v660
        %v744 = vunpack.c.l.s4 1983009808
        %v745 = vunpack.c.0.s8 %v744
        %v746 = vlaneseq
        %v747 = vshrl.u32 %v746, 7
        %v748 = vsub.s32 %v745, %v747
        %v749 = vrot.slane %v742, %v748
        %v750 = vcombine.high %v749, %v749
        %751 = vrot.lane.b32.xlu0 %v749, 110
        %v752 = vpop.permute.xlu0 %751
        %753 = vrot.lane.b32.xlu0 %v750, 110
        %v754 = vpop.permute.xlu0 %753
        %vm755 = vcmask 900096
        %v756 = vsel %vm755, %v752, %v754
        %v759 = vunpack.c.l.s4 1983009808
        %v760 = vunpack.c.0.s8 %v759
        %v761 = vlaneseq
        %v762 = vshrl.u32 %v761, 7
        %v763 = vsub.s32 %v760, %v762
        %v764 = vrot.slane %v667, %v763
        %v765 = vcombine.low %v764, %v764
        %766 = vrot.lane.b32.xlu0 %v765, 96
        %v767 = vpop.permute.xlu0 %766
        %768 = vrot.lane.b32.xlu0 %v764, 96
        %v769 = vpop.permute.xlu0 %768
        %vm770 = vcmask 785408
        %v771 = vsel %vm770, %v767, %v769
        %v772 = vcombine.low %v629, %v629
        %v774 = vunpack.c.l.s4 1983009808
        %v775 = vunpack.c.0.s8 %v774
        %v776 = vlaneseq
        %v777 = vshrl.u32 %v776, 7
        %v778 = vsub.s32 %v775, %v777
        %v779 = vrot.slane %v772, %v778
        %v780 = vcombine.low %v779, %v779
        %781 = vrot.lane.b32.xlu0 %v780, 95
        %v782 = vpop.permute.xlu0 %781
        %783 = vrot.lane.b32.xlu0 %v779, 95
        %v784 = vpop.permute.xlu0 %783
        %vm785 = vcmask 777216
        %v786 = vsel %vm785, %v782, %v784
        %v789 = vunpack.c.l.s4 1983009808
        %v790 = vunpack.c.0.s8 %v789
        %v791 = vlaneseq
        %v792 = vshrl.u32 %v791, 7
        %v793 = vsub.s32 %v790, %v792
        %v794 = vrot.slane %v674, %v793
        %v795 = vcombine.high %v794, %v794
        %796 = vrot.lane.b32.xlu0 %v794, 94
        %v797 = vpop.permute.xlu0 %796
        %798 = vrot.lane.b32.xlu0 %v795, 94
        %v799 = vpop.permute.xlu0 %798
        %vm800 = vcmask 769024
        %v801 = vsel %vm800, %v797, %v799
        %vm802 = vcmask 1041408
        %v805 = vsel %vm802, %v682, %v694
        %v807 = vsel %vm802, %v683, %v694
        %vm808 = vcmask 1043456
        %v810 = vsel %vm808, %v805, %v705
        %v812 = vsel %vm808, %v807, %v709
        %vm813 = vcmask 1045504
        %v815 = vsel %vm813, %v810, %v721
        %v817 = vsel %vm813, %v812, %v725
        %v820 = vsel %vm802, %v736, %v752
        %v823 = vsel %vm802, %v740, %v756
        %v825 = vsel %vm808, %v820, %v767
        %v827 = vsel %vm808, %v823, %v771
        %v829 = vsel %vm813, %v825, %v782
        %v831 = vsel %vm813, %v827, %v786
        %v832 = vld [vmem:[%s3] sm:$0xf]
        %v833 = vld [vmem:[%s3 + $0x4] sm:$0xf]
        %v834 = vld [vmem:[%s4] sm:$0xff]
        %v835 = vld [vmem:[%s4 + $0x8] sm:$0xff]
        %837 = vset.pattern.permute.xlu0 0
        %838 = vperm.xlu0 %837, %v834
        %v839 = vpop.permute.xlu0 %838
        %842 = vset.pattern.permute.xlu0 0
        %843 = vperm.xlu0 %842, %v835
        %v844 = vpop.permute.xlu0 %843
        %v848 = vunpack.c.l.b16 %v832
        %v849 = vunpack.c.l.b16 %v833
        %v850 = vpack.c.b16 %v849, %v848
        %855 = vrot.lane.b32.xlu0 %v815, 1
        %v856 = vpop.permute.xlu0 %855
        %857 = vrot.lane.b32.xlu0 %v817, 1
        %v858 = vpop.permute.xlu0 %857
        %859 = vrot.lane.b32.xlu0 %v829, 1
        %v860 = vpop.permute.xlu0 %859
        %861 = vrot.lane.b32.xlu0 %v831, 1
        %v862 = vpop.permute.xlu0 %861
        %863 = vrot.lane.b32.xlu0 %v797, 1
        %v864 = vpop.permute.xlu0 %863
        %865 = vrot.lane.b32.xlu0 %v801, 1
        %v866 = vpop.permute.xlu0 %865
        %v867 = vsel %vm643, %v856, %v858
        %v868 = vsel %vm643, %v860, %v862
        %v869 = vsel %vm643, %v864, %v866
        %vm872 = vcmask 293888
        %v874 = vsel %vm872, %v850, 0
        %v877 = vsel %vm802, %v869, 0
        %879 = vmatprep.subr.bf16.mxu0 0
        %880 = vmatpush1.bf16.msra.mxu0 %v867
        %881 = vmatprep.subr.bf16.mxu0 0
        %882 = vmatpush1.bf16.msra.mxu0 %v868
        %883 = vmatprep.subr.bf16.mxu0 0
        %884 = vmatpush1.bf16.msra.mxu0 %v877
        %885 = vmatprep.subr.bf16.mxu0 0
        %886 = vmatpush1.bf16.msra.mxu0 0
        %887 = vmatprep.subr.bf16.mxu0 0
        %888 = vmatpush1.bf16.msra.mxu0 0
        %889 = vmatprep.subr.bf16.mxu0 0
        %890 = vmatpush1.bf16.msra.mxu0 0
        %891 = vmatprep.subr.bf16.mxu0 0
        %892 = vmatpush1.bf16.msra.mxu0 0
        %893 = vmatprep.subr.bf16.mxu0 0
        %894 = vmatpush1.bf16.msra.mxu0 0
        %895 = vmatprep.subr.bf16.mxu0 0
        %896 = vmatpush1.bf16.msra.mxu0 0
        %897 = vmatprep.subr.bf16.mxu0 0
        %898 = vmatpush1.bf16.msra.mxu0 0
        %899 = vmatprep.subr.bf16.mxu0 0
        %900 = vmatpush1.bf16.msra.mxu0 0
        %901 = vmatprep.subr.bf16.mxu0 0
        %902 = vmatpush1.bf16.msra.mxu0 0
        %903 = vmatprep.subr.bf16.mxu0 0
        %904 = vmatpush1.bf16.msra.mxu0 0
        %905 = vmatprep.subr.bf16.mxu0 0
        %906 = vmatpush1.bf16.msra.mxu0 0
        %907 = vmatprep.subr.bf16.mxu0 0
        %908 = vmatpush1.bf16.msra.mxu0 0
        %909 = vmatprep.subr.bf16.mxu0 0
        %910 = vmatpush1.bf16.msra.mxu0 0
        %911 = vmatprep.mubr.bf16.mxu0 0
        %912 = vmatmul.mubr.bf16.gmra.mrb[0].mxu0 %v874
        %v913 = vpop.f32.mrb[0].mxu0
        %v914 = vadd.f32 %v839, %v913
        %v915 = vpop.f32.mrb[0].mxu0
        %v916 = vpop.f32.mrb[0].mxu0
        %v917 = vadd.f32 %v844, %v916
        %v918 = vpop.f32.mrb[0].mxu0
        %919 = vdwg.mxu0
        %vm920 = vcmp.gt.f32.partialorder %v914, 0.0
        %vm921 = vcmp.gt.f32.partialorder %v917, 0.0
        %922 = vset.pattern.permute.xlu0 1
        %923 = vperm.xlu0 %922, %v834
        %v924 = vpop.permute.xlu0 %923
        %926 = vset.pattern.permute.xlu0 1
        %927 = vperm.xlu0 %926, %v835
        %v928 = vpop.permute.xlu0 %927
        %v930 = vmul.f32 %v914, %v924
        %v931 = vmul.f32 %v917, %v928
        %v932 = vsel %vm920, %v914, %v930
        %v933 = vsel %vm921, %v917, %v931
        %934 = vst [vmem:[%s370] sm:$0xff] %v932
        %935 = vst [vmem:[%s370 + $0x8] sm:$0xff] %v933
        %s936 = sand.u32 %s207, 1
        %s937 = scalar_lea.sflag [#allocation5], %s936
        %s938 = sand.u32 %s207, 1
        %s939 = smul.addr %s938, 16
        %s940 = scalar_lea.vmem [#allocation8], %s939
        // Predicated region
        $region69: #{tpu_custom_call.1} parent=43 // pred_check
          %p941 = pneg %p217
        $region70: #{tpu_custom_call.1} parent=43 // pred_check_branch
          %943 = sbr.rel (%p941) target = $region72
        $region71: #{tpu_custom_call.1} parent=43 // pred_region
          %s945 = ssub.s32 256, 256
          %946 = vsyncadd %s937, %s945
          %s947 = smul.addr %s30, 4
          %s948 = sadd.s32 %s31, %s947
          %s949 = smul.addr %s948, 128
          %s950 = scalar_lea.hbm %s6, %s949
          %s951 = sshll.u32 %s940, 4
          %s952 = int_to_ptr.vmem [resolvable:$true] %s951
          %957 = dma.vmem_to_hbm [thread:$0]  %s952, 256, %s950, %s937, 128, 256, 8
        $region72: #{tpu_custom_call.1} parent=43 // pred_fallthru
          _
      $region44: #{tpu_custom_call.1} parent=5 // pred_fallthru
        _
      %p958 = scmp.le.s32.totalorder 2, %s21
      // Predicated region
      $region73: #{tpu_custom_call.1} parent=5 // pred_check
        %p959 = pneg %p958
      $region74: #{tpu_custom_call.1} parent=5 // pred_check_branch
        %961 = sbr.rel (%p959) target = $region76
      $region75: #{tpu_custom_call.1} parent=5 // pred_region
        %s962 = ssub.s32 %s21, 2
        // Predicated region
        $region77: #{tpu_custom_call.1} parent=75 // pred_check
          %p963 = pneg %p223
        $region78: #{tpu_custom_call.1} parent=75 // pred_check_branch
          %965 = sbr.rel (%p963) target = $region80
        $region79: #{tpu_custom_call.1} parent=75 // pred_region
          %s966 = sand.u32 %s208, 1
          %s967 = scalar_lea.sflag [#allocation5], %s966
          %s968 = sand.u32 %s208, 1
          %s969 = smul.addr %s968, 16
          %s970 = scalar_lea.vmem [#allocation8], %s969
          %971 = dma.done %s967, 256
        $region80: #{tpu_custom_call.1} parent=75 // pred_fallthru
          _
      $region76: #{tpu_custom_call.1} parent=5 // pred_fallthru
        _
    $region6: #{tpu_custom_call.1} parent=1 // loop_footer
      %s25 = sadd.s32 1, %s21
    $region7: #{tpu_custom_call.1} parent=1 // loop_footer_branch
      %20 = sbr.rel target = $region3
    $region8: #{tpu_custom_call.1} parent=1 // loop_exit
      _
    %972 = vsyncpa [#allocation4], 1
    %s973 = scalar_lea.sflag [#allocation4], 1
    %974 = vsyncpa %s973, 1
    %975 = vsyncpa [#allocation7], 1
    %s976 = scalar_lea.sflag [#allocation7], 1
    %977 = vsyncpa %s976, 1
    %978 = vsyncpa [#allocation5], 1
    %s979 = scalar_lea.sflag [#allocation5], 1
    %980 = vsyncpa %s979, 1

</llo_original>
